<compile_context>
chip_gen: v5e
topology: v5e:2x2
jax: 0.10.0
libtpu: 0.0.40
codegen_flags: <defaults>
</compile_context>

<pallas_src>
import math

import jax
import jax.numpy as jnp
from jax import lax
from jax.experimental import pallas as pl
from jax.experimental.pallas import tpu as pltpu


# ----------------------------------------------------------------------------
# Pallas kernel: fused (circular conv as one GEMM) + positional + temporal add
# ----------------------------------------------------------------------------
def data_embedding_kernel(x3_ref, idx_ref, pos_ref, w3_ref, tt_ref, o_ref):
    tl = x3_ref.shape[1]          # rows in this L-tile
    vocab = tt_ref.shape[0]       # 13 + 32 + 7 + 24 = 76
    nfeat = idx_ref.shape[2]      # 4 time features (freq='h')

    # Value embedding: circular Conv1d(k=3, bias=False) expressed as one MXU matmul.
    # x3 = [x[t-1] | x[t] | x[t+1]] (TL, 3C);  w3 = [W0^T; W1^T; W2^T] (3C, D).
    x3 = x3_ref[0]                                                    # (TL, 3C)
    val = jnp.dot(x3, w3_ref[...], preferred_element_type=jnp.float32)  # (TL, D)

    # Fixed temporal embedding: multi-hot over the concatenated small tables, then one
    # (TL, 76) @ (76, D) MXU matmul (avoids gathers and any HBM intermediate).
    idx = idx_ref[0]                                                  # (TL, 4) int32, pre-offset
    vocab_iota = lax.broadcasted_iota(jnp.int32, (tl, vocab), 1)      # (TL, 76)
    hot = jnp.zeros((tl, vocab), jnp.float32)
    for j in range(nfeat):                                            # static unroll (4)
        hot = hot + (idx[:, j:j + 1] == vocab_iota).astype(jnp.float32)
    temporal = jnp.dot(hot, tt_ref[...], preferred_element_type=jnp.float32)  # (TL, D)

    # + positional embedding (streamed per L-tile) -> lane-dense store of the full D row.
    o_ref[0] = (val + temporal + pos_ref[...]).astype(o_ref.dtype)


def _choose_tile_l(L, target=512):
    """Largest L-tile <= target that divides L and satisfies the (8, 128) sublane rule."""
    if L <= target:
        return L
    start = target - (target % 8)
    for t in range(start, 7, -8):      # multiples of 8
        if L % t == 0:
            return t
    return L                           # fall back: whole sequence per step


def data_embedding_pallas(x3, idx, pos_l, w3, temp_tbl, out_dtype=jnp.float32):
    """x3: (B, L, 3C) f32; idx: (B, L, 4) int32 (pre-offset); pos_l: (L, D) f32;
    w3: (3C, D) f32; temp_tbl: (V, D) f32  ->  (B, L, D)."""
    B, L, C3 = x3.shape
    D = w3.shape[1]
    V = temp_tbl.shape[0]
    NF = idx.shape[2]

    TL = _choose_tile_l(L)
    nL = L // TL

    grid_spec = pltpu.PrefetchScalarGridSpec(
        num_scalar_prefetch=0,
        grid=(B, nL),
        in_specs=[
            pl.BlockSpec((1, TL, C3), lambda b, l: (b, l, 0)),   # x3 (shifted+concat input)
            pl.BlockSpec((1, TL, NF), lambda b, l: (b, l, 0)),   # time-feature indices
            pl.BlockSpec((TL, D), lambda b, l: (l, 0)),          # positional rows for this tile
            pl.BlockSpec((C3, D), lambda b, l: (0, 0)),          # fused conv weight (constant)
            pl.BlockSpec((V, D), lambda b, l: (0, 0)),           # temporal tables (constant)
        ],
        out_specs=pl.BlockSpec((1, TL, D), lambda b, l: (b, l, 0)),
    )

    return pl.pallas_call(
        data_embedding_kernel,
        out_shape=jax.ShapeDtypeStruct((B, L, D), out_dtype),
        grid_spec=grid_spec,
        compiler_params=pltpu.CompilerParams(
            dimension_semantics=("parallel", "parallel")),
    )(x3, idx, pos_l, w3, temp_tbl)


# ----------------------------------------------------------------------------
# Parameter / table construction (deterministic, matching __init__ shapes)
# ----------------------------------------------------------------------------
def sinusoidal_table(n, d):
    """Same formula as PositionalEmbedding / FixedEmbedding."""
    pos = jnp.arange(n, dtype=jnp.float32)[:, None]
    div = jnp.exp(jnp.arange(0, d, 2, dtype=jnp.float32) * -(math.log(10000.0) / d))
    tab = jnp.zeros((n, d), dtype=jnp.float32)
    tab = tab.at[:, 0::2].set(jnp.sin(pos * div))
    tab = tab.at[:, 1::2].set(jnp.cos(pos * div))
    return tab


def make_params(key, c_in, d_model):
    # Conv1d weight (d_model, c_in, 3), kaiming_normal_(fan_in, leaky_relu) => std = sqrt(2/(c_in*3))
    std = math.sqrt(2.0 / (c_in * 3))
    w_conv = std * jax.random.normal(key, (d_model, c_in, 3), dtype=jnp.float32)
    tables = {
        "month": sinusoidal_table(13, d_model),
        "day": sinusoidal_table(32, d_model),
        "weekday": sinusoidal_table(7, d_model),
        "hour": sinusoidal_table(24, d_model),
        "pos": sinusoidal_table(5000, d_model),
    }
    return w_conv, tables


def data_embedding_forward(x, x_mark, w_conv, tables):
    """Full DataEmbedding forward (embed_type='fixed', freq='h', eval-mode dropout)."""
    B, L, C = x.shape
    # Fused conv weight: out[t] = x[t-1] @ W0^T + x[t] @ W1^T + x[t+1] @ W2^T.
    w3 = jnp.concatenate(
        [w_conv[:, :, 0].T, w_conv[:, :, 1].T, w_conv[:, :, 2].T], axis=0)  # (3C, D)
    # Wrapper-side circular shifts (C << D, so the 3x duplication of x is negligible HBM).
    x3 = jnp.concatenate(
        [jnp.roll(x, 1, axis=1), x, jnp.roll(x, -1, axis=1)], axis=-1)      # (B, L, 3C)
    # Combined temporal table [month(13) | day(32) | weekday(7) | hour(24)] and pre-offset
    # indices so the kernel builds one multi-hot matrix over a 76-row vocabulary.
    temp_tbl = jnp.concatenate(
        [tables["month"], tables["day"], tables["weekday"], tables["hour"]], axis=0)
    off = jnp.array([0, 13, 13 + 32, 13 + 32 + 7], dtype=jnp.int32)
    idx = x_mark[:, :, :4].astype(jnp.int32) + off[None, None, :]           # (B, L, 4)
    pos_l = tables["pos"][:L]                                               # (L, D)
    # NOTE: inputs could be cast to bfloat16 (f32 accumulation) to halve HBM traffic;
    # kept in f32 here for an exact check against the reference.
    # TODO(synk): nn.Dropout(p=0.1) in training mode is stochastic; eval mode is identity (used here).
    return data_embedding_pallas(x3, idx, pos_l, w3, temp_tbl)


# ----------------------------------------------------------------------------
# Pure-JAX reference (for correctness check)
# ----------------------------------------------------------------------------
def reference_forward(x, x_mark, w_conv, tables):
    B, L, _ = x.shape
    x_prev = jnp.roll(x, 1, axis=1)
    x_next = jnp.roll(x, -1, axis=1)
    val = (jnp.einsum("blc,cd->bld", x_prev, w_conv[:, :, 0].T)
           + jnp.einsum("blc,cd->bld", x, w_conv[:, :, 1].T)
           + jnp.einsum("blc,cd->bld", x_next, w_conv[:, :, 2].T))
    temporal = (tables["hour"][x_mark[:, :, 3]]
                + tables["weekday"][x_mark[:, :, 2]]
                + tables["day"][x_mark[:, :, 1]]
                + tables["month"][x_mark[:, :, 0]])
    positional = tables["pos"][:L][None, :, :]
    return val + temporal + positional


if __name__ == "__main__":
    B, L, C_IN, D_MODEL = 2, 16, 7, 128   # D_MODEL multiple of 128 -> lane-dense stores

    key = jax.random.PRNGKey(0)
    k_w, k_x, k_mo, k_da, k_wd, k_hr, k_mi = jax.random.split(key, 7)

    w_conv, tables = make_params(k_w, C_IN, D_MODEL)

    x = jax.random.normal(k_x, (B, L, C_IN), dtype=jnp.float32)
    x_mark = jnp.stack([
        jax.random.randint(k_mo, (B, L), 0, 13),   # month
        jax.random.randint(k_da, (B, L), 0, 32),   # day
        jax.random.randint(k_wd, (B, L), 0, 7),    # weekday
        jax.random.randint(k_hr, (B, L), 0, 24),   # hour
        jax.random.randint(k_mi, (B, L), 0, 4),    # minute (unused for freq='h')
    ], axis=-1).astype(jnp.int32)

    out = data_embedding_forward(x, x_mark, w_conv, tables)
    out = jax.block_until_ready(out)

    ref = reference_forward(x, x_mark, w_conv, tables)
    assert out.shape == (B, L, D_MODEL)
    assert jnp.allclose(out, ref, atol=1e-3, rtol=1e-3), "Pallas output mismatch vs reference"

    print("KERNEL_OK")
</pallas_src>

<mosaic_0001>
module attributes {stable_mosaic.version = 11 : i64} {
  func.func @data_embedding_kernel(%arg0: i32, %arg1: i32, %arg2: memref<1x16x21xf32, #tpu.memory_space<vmem>>, %arg3: memref<1x16x4xi32, #tpu.memory_space<vmem>>, %arg4: memref<16x128xf32, #tpu.memory_space<vmem>>, %arg5: memref<21x128xf32, #tpu.memory_space<vmem>>, %arg6: memref<76x128xf32, #tpu.memory_space<vmem>>, %arg7: memref<1x16x128xf32, #tpu.memory_space<vmem>>) attributes {dimension_semantics = [#tpu.dimension_semantics<parallel>, #tpu.dimension_semantics<parallel>], iteration_bounds = array<i64: 2, 1>, scalar_prefetch = 0 : i64, scratch_operands = 0 : i64, tpu.core_type = #tpu.core_type<tc>, window_params = [{transform_indices = @transform_0, window_bounds = array<i64: 1, 16, 21>}, {transform_indices = @transform_1, window_bounds = array<i64: 1, 16, 4>}, {transform_indices = @transform_2, window_bounds = array<i64: 16, 128>}, {pipeline_mode = #tpu.pipeline_mode<synchronous>, transform_indices = @transform_3, window_bounds = array<i64: 21, 128>}, {pipeline_mode = #tpu.pipeline_mode<synchronous>, transform_indices = @transform_4, window_bounds = array<i64: 76, 128>}, {transform_indices = @transform_5, window_bounds = array<i64: 1, 16, 128>}]} {
    %c0 = arith.constant 0 : index
    %c0_0 = arith.constant 0 : index
    %c0_1 = arith.constant 0 : index
    %0 = vector.load %arg2[%c0, %c0_0, %c0_1] : memref<1x16x21xf32, #tpu.memory_space<vmem>>, vector<1x16x21xf32>
    %1 = vector.shape_cast %0 : vector<1x16x21xf32> to vector<16x21xf32>
    %c0_2 = arith.constant 0 : index
    %c0_3 = arith.constant 0 : index
    %2 = vector.load %arg5[%c0_2, %c0_3] : memref<21x128xf32, #tpu.memory_space<vmem>>, vector<21x128xf32>
    %cst = arith.constant dense<0.000000e+00> : vector<16x128xf32>
    %3 = tpu.matmul %1, %2, %cst {dimension_numbers = #tpu.dot_dimension_numbers<[1], [0], [0], [1], [0, 0, 1, 1], [], []>} : vector<16x21xf32>, vector<21x128xf32>, vector<16x128xf32> -> vector<16x128xf32>
    %c0_4 = arith.constant 0 : index
    %c0_5 = arith.constant 0 : index
    %c0_6 = arith.constant 0 : index
    %4 = vector.load %arg3[%c0_4, %c0_5, %c0_6] : memref<1x16x4xi32, #tpu.memory_space<vmem>>, vector<1x16x4xi32>
    %5 = vector.shape_cast %4 : vector<1x16x4xi32> to vector<16x4xi32>
    %6 = tpu.iota {dimensions = array<i32: 1>} : vector<16x76xi32>
    %cst_7 = arith.constant 0.000000e+00 : f32
    %7 = vector.broadcast %cst_7 : f32 to vector<16x76xf32>
    %8 = vector.extract_strided_slice %5 {offsets = [0, 0], sizes = [16, 1], strides = [1, 1]} : vector<16x4xi32> to vector<16x1xi32>
    %9 = vector.broadcast %8 : vector<16x1xi32> to vector<16x76xi32>
    %10 = arith.cmpi eq, %9, %6 : vector<16x76xi32>
    %11 = arith.extui %10 : vector<16x76xi1> to vector<16x76xi32>
    %12 = arith.sitofp %11 : vector<16x76xi32> to vector<16x76xf32>
    %13 = arith.addf %7, %12 : vector<16x76xf32>
    %14 = vector.extract_strided_slice %5 {offsets = [0, 1], sizes = [16, 1], strides = [1, 1]} : vector<16x4xi32> to vector<16x1xi32>
    %15 = vector.broadcast %14 : vector<16x1xi32> to vector<16x76xi32>
    %16 = arith.cmpi eq, %15, %6 : vector<16x76xi32>
    %17 = arith.extui %16 : vector<16x76xi1> to vector<16x76xi32>
    %18 = arith.sitofp %17 : vector<16x76xi32> to vector<16x76xf32>
    %19 = arith.addf %13, %18 : vector<16x76xf32>
    %20 = vector.extract_strided_slice %5 {offsets = [0, 2], sizes = [16, 1], strides = [1, 1]} : vector<16x4xi32> to vector<16x1xi32>
    %21 = vector.broadcast %20 : vector<16x1xi32> to vector<16x76xi32>
    %22 = arith.cmpi eq, %21, %6 : vector<16x76xi32>
    %23 = arith.extui %22 : vector<16x76xi1> to vector<16x76xi32>
    %24 = arith.sitofp %23 : vector<16x76xi32> to vector<16x76xf32>
    %25 = arith.addf %19, %24 : vector<16x76xf32>
    %26 = vector.extract_strided_slice %5 {offsets = [0, 3], sizes = [16, 1], strides = [1, 1]} : vector<16x4xi32> to vector<16x1xi32>
    %27 = vector.broadcast %26 : vector<16x1xi32> to vector<16x76xi32>
    %28 = arith.cmpi eq, %27, %6 : vector<16x76xi32>
    %29 = arith.extui %28 : vector<16x76xi1> to vector<16x76xi32>
    %30 = arith.sitofp %29 : vector<16x76xi32> to vector<16x76xf32>
    %31 = arith.addf %25, %30 : vector<16x76xf32>
    %c0_8 = arith.constant 0 : index
    %c0_9 = arith.constant 0 : index
    %32 = vector.load %arg6[%c0_8, %c0_9] : memref<76x128xf32, #tpu.memory_space<vmem>>, vector<76x128xf32>
    %cst_10 = arith.constant dense<0.000000e+00> : vector<16x128xf32>
    %33 = tpu.matmul %31, %32, %cst_10 {dimension_numbers = #tpu.dot_dimension_numbers<[1], [0], [0], [1], [0, 0, 1, 1], [], []>} : vector<16x76xf32>, vector<76x128xf32>, vector<16x128xf32> -> vector<16x128xf32>
    %34 = arith.addf %3, %33 : vector<16x128xf32>
    %c0_11 = arith.constant 0 : index
    %c0_12 = arith.constant 0 : index
    %35 = vector.load %arg4[%c0_11, %c0_12] : memref<16x128xf32, #tpu.memory_space<vmem>>, vector<16x128xf32>
    %36 = arith.addf %34, %35 : vector<16x128xf32>
    %c0_13 = arith.constant 0 : index
    %c0_14 = arith.constant 0 : index
    %c0_15 = arith.constant 0 : index
    %37 = vector.load %arg7[%c0_13, %c0_14, %c0_15] : memref<1x16x128xf32, #tpu.memory_space<vmem>>, vector<1x16x128xf32>
    %38 = vector.shape_cast %37 : vector<1x16x128xf32> to vector<16x128xf32>
    %39 = vector.shape_cast %36 : vector<16x128xf32> to vector<1x16x128xf32>
    tpu.vector_store %arg7[%c0_13, %c0_14, %c0_15], %39 {strides = array<i32>} : memref<1x16x128xf32, #tpu.memory_space<vmem>>, vector<1x16x128xf32>,
    return
  }
  func.func @transform_0(%arg0: i32, %arg1: i32) -> (i32, i32, i32) {
    %c0_i32 = arith.constant 0 : i32
    %c0_i32_0 = arith.constant 0 : i32
    return %arg0, %arg1, %c0_i32 : i32, i32, i32
  }
  func.func @transform_1(%arg0: i32, %arg1: i32) -> (i32, i32, i32) {
    %c0_i32 = arith.constant 0 : i32
    %c0_i32_0 = arith.constant 0 : i32
    return %arg0, %arg1, %c0_i32 : i32, i32, i32
  }
  func.func @transform_2(%arg0: i32, %arg1: i32) -> (i32, i32) {
    %c0_i32 = arith.constant 0 : i32
    %c0_i32_0 = arith.constant 0 : i32
    return %arg1, %c0_i32 : i32, i32
  }
  func.func @transform_3(%arg0: i32, %arg1: i32) -> (i32, i32) {
    %c0_i32 = arith.constant 0 : i32
    %c0_i32_0 = arith.constant 0 : i32
    %c0_i32_1 = arith.constant 0 : i32
    return %c0_i32, %c0_i32_0 : i32, i32
  }
  func.func @transform_4(%arg0: i32, %arg1: i32) -> (i32, i32) {
    %c0_i32 = arith.constant 0 : i32
    %c0_i32_0 = arith.constant 0 : i32
    %c0_i32_1 = arith.constant 0 : i32
    return %c0_i32, %c0_i32_0 : i32, i32
  }
  func.func @transform_5(%arg0: i32, %arg1: i32) -> (i32, i32, i32) {
    %c0_i32 = arith.constant 0 : i32
    %c0_i32_0 = arith.constant 0 : i32
    return %arg0, %arg1, %c0_i32 : i32, i32, i32
  }
}

</mosaic_0001>

<llo_original>
// kernel: tpu_custom_call.1
$region0: #{tpu_custom_call.1}
  #allocation0 [shape = 'u32[]', space=smem, size = 0x4, offset = 0x4, fixed_abs, tag = 'smem constant byte address 0x4 - core index']
  #allocation1 [shape = 'u32[72,128]{1,0:T(1,128)}', space=vmem, size = 0x9000, scoped, tag = 'internal scratch']
  %s0 = inlined_call_operand.vmem [shape: f32[2,16,21], index: 0, kind: input, shape index: {}]
  %s1 = inlined_call_operand.vmem [shape: s32[2,16,4], index: 1, kind: input, shape index: {}]
  %s2 = inlined_call_operand.hbm [shape: f32[16,128], index: 2, kind: input, shape index: {}]
  %s3 = inlined_call_operand.hbm [shape: f32[21,128], index: 3, kind: input, shape index: {}]
  %s4 = inlined_call_operand.hbm [shape: f32[76,128], index: 4, kind: input, shape index: {}]
  %s5 = inlined_call_operand.hbm [shape: f32[2,16,128], index: 5, kind: output, shape index: {}]
  %s6 = sld [smem:[#allocation0]]
  $region65: #{tpu_custom_call.1} parent=0
    _
  %s8 = ssub.s32 1, %s6
  %s9 = scalar_select 0, %s8, %s6
  $region1: #{tpu_custom_call.1} parent=0
    #allocation2 [shape = 'u8[8192]{0}', space=vmem, size = 0x2000, scoped, tag = 'input window, operand 2, single buffered']
    #allocation3 [shape = 's32[2]{0}', space=sflag, size = 0x8, scoped, tag = 'scoped memory for tpu_custom_call.1']
    #allocation4 [shape = 's32[2]{0}', space=sflag, size = 0x8, scoped, tag = 'scoped memory for tpu_custom_call.1']
    #allocation5 [shape = 'u8[12288]{0}', space=vmem, size = 0x3000, scoped, tag = 'input window, operand 3, single buffered']
    #allocation6 [shape = 's32[1]{0}', space=sflag, size = 0x4, scoped, tag = 'scoped memory for tpu_custom_call.1']
    #allocation7 [shape = 'u8[40960]{0}', space=vmem, size = 0xa000, scoped, tag = 'input window, operand 4, single buffered']
    #allocation8 [shape = 'u8[16384]{0}', space=vmem, size = 0x4000, scoped, tag = 'output window, operand 0']
    %10 = vsyncpa [#allocation3], 0
    %11 = vsyncpa [#allocation6], 0
    %12 = vsyncpa [#allocation4], 0
    %s13 = scalar_lea.sflag [#allocation4], 1
    %14 = vsyncpa %s13, 0
    loop: start=0, step=1, limit=4
    $region2: #{tpu_custom_call.1} parent=1 // loop_pre_header
      _
    $region3: #{tpu_custom_call.1} parent=1 // loop_header
      %s16 = sphi 0, %s20
      %p17 = scmp.ge.s32.totalorder %s16, 4
      %s23 = sphi 0, %s35
      %s24 = sphi 0, %s31
      %s25 = sphi 0, %s23
      %s26 = sphi 0, %s24
      %s27 = sphi 0, %s25
      %s28 = sphi 0, %s26
      %s40 = sphi 0, %s42
      %s43 = sphi 0, %s40
      %s44 = sphi 0, %s43
      %s60 = sphi 0, %s44
      %s68 = sphi 0, %s70
      %s71 = sphi 0, %s68
      %s72 = sphi 0, %s71
      %s88 = sphi 0, %s72
      %s94 = sphi 0, %s96
      %s97 = sphi 0, %s94
      %s98 = sphi 0, %s97
      %s114 = sphi 0, %s98
      %s118 = sphi 0, %s118
      %s120 = sphi 0, %s118
      %s121 = sphi 0, %s120
      %s135 = sphi 0, %s121
      %s139 = sphi 0, %s139
      %s141 = sphi 0, %s139
      %s142 = sphi 0, %s141
      %s156 = sphi 0, %s142
      %s164 = sphi 0, %s166
      %s167 = sphi 0, %s164
      %s168 = sphi 0, %s167
      %s184 = sphi 0, %s168
    $region4: #{tpu_custom_call.1} parent=1 // loop_header_branch
      %19 = sbr.rel (%p17) target = $region8
    $region5: #{tpu_custom_call.1} parent=1 // loop_body
      %s21 = ssub.s32 %s16, 1
      %s22 = ssub.s32 %s16, 2
      %s29 = sadd.s32 1, %s24
      %p30 = scmp.ge.s32.totalorder %s29, 1
      %s31 = scalar_select %p30, 0, %s29
      %s32 = sadd.s32 1, %s23
      %s33 = scalar_select %p30, %s32, %s23
      %p34 = scmp.ge.s32.totalorder %s33, 2
      %s35 = scalar_select %p34, 0, %s33
      %s36 = ssub.s32 %s23, %s35
      %s37 = ssub.s32 %s24, %s31
      %s38 = sor.u32 %s36, %s37
      %p39 = scmp.eq.s32.totalorder %s38, 0
      %s41 = sadd.s32 %s40, 1
      %s42 = scalar_select %p39, %s40, %s41
      %p45 = pneg %p39
      %p46 = scmp.eq.s32.totalorder %s16, 1
      %p47 = por %p45, %p46
      %p48 = scmp.ne.s32.totalorder %s40, %s43
      %p49 = scmp.eq.s32.totalorder %s16, 0
      %p50 = por %p48, %p49
      %p51 = scmp.ne.s32.totalorder %s40, %s43
      %p52 = scmp.eq.s32.totalorder %s21, 1
      %p53 = por %p51, %p52
      %p54 = scmp.ne.s32.totalorder %s43, %s44
      %p55 = scmp.eq.s32.totalorder %s21, 0
      %p56 = por %p54, %p55
      %p57 = scmp.ne.s32.totalorder %s43, %s44
      %p58 = scmp.eq.s32.totalorder %s22, 1
      %p59 = por %p57, %p58
      %p61 = scmp.ne.s32.totalorder %s44, %s60
      %p62 = scmp.eq.s32.totalorder %s22, 0
      %p63 = por %p61, %p62
      %s64 = ssub.s32 %s23, %s35
      %s65 = ssub.s32 %s24, %s31
      %s66 = sor.u32 %s64, %s65
      %p67 = scmp.eq.s32.totalorder %s66, 0
      %s69 = sadd.s32 %s68, 1
      %s70 = scalar_select %p67, %s68, %s69
      %p73 = pneg %p67
      %p74 = scmp.eq.s32.totalorder %s16, 1
      %p75 = por %p73, %p74
      %p76 = scmp.ne.s32.totalorder %s68, %s71
      %p77 = scmp.eq.s32.totalorder %s16, 0
      %p78 = por %p76, %p77
      %p79 = scmp.ne.s32.totalorder %s68, %s71
      %p80 = scmp.eq.s32.totalorder %s21, 1
      %p81 = por %p79, %p80
      %p82 = scmp.ne.s32.totalorder %s71, %s72
      %p83 = scmp.eq.s32.totalorder %s21, 0
      %p84 = por %p82, %p83
      %p85 = scmp.ne.s32.totalorder %s71, %s72
      %p86 = scmp.eq.s32.totalorder %s22, 1
      %p87 = por %p85, %p86
      %p89 = scmp.ne.s32.totalorder %s72, %s88
      %p90 = scmp.eq.s32.totalorder %s22, 0
      %p91 = por %p89, %p90
      %s92 = ssub.s32 %s24, %s31
      %p93 = scmp.eq.s32.totalorder %s92, 0
      %s95 = sadd.s32 %s94, 1
      %s96 = scalar_select %p93, %s94, %s95
      %p99 = pneg %p93
      %p100 = scmp.eq.s32.totalorder %s16, 1
      %p101 = por %p99, %p100
      %p102 = scmp.ne.s32.totalorder %s94, %s97
      %p103 = scmp.eq.s32.totalorder %s16, 0
      %p104 = por %p102, %p103
      %p105 = scmp.ne.s32.totalorder %s94, %s97
      %p106 = scmp.eq.s32.totalorder %s21, 1
      %p107 = por %p105, %p106
      %p108 = scmp.ne.s32.totalorder %s97, %s98
      %p109 = scmp.eq.s32.totalorder %s21, 0
      %p110 = por %p108, %p109
      %p111 = scmp.ne.s32.totalorder %s97, %s98
      %p112 = scmp.eq.s32.totalorder %s22, 1
      %p113 = por %p111, %p112
      %p115 = scmp.ne.s32.totalorder %s98, %s114
      %p116 = scmp.eq.s32.totalorder %s22, 0
      %p117 = por %p115, %p116
      %s119 = sadd.s32 %s118, 1
      %p122 = scmp.eq.s32.totalorder %s16, 1
      %p123 = scmp.ne.s32.totalorder %s118, %s120
      %p124 = scmp.eq.s32.totalorder %s16, 0
      %p125 = por %p123, %p124
      %p126 = scmp.ne.s32.totalorder %s118, %s120
      %p127 = scmp.eq.s32.totalorder %s21, 1
      %p128 = por %p126, %p127
      %p129 = scmp.ne.s32.totalorder %s120, %s121
      %p130 = scmp.eq.s32.totalorder %s21, 0
      %p131 = por %p129, %p130
      %p132 = scmp.ne.s32.totalorder %s120, %s121
      %p133 = scmp.eq.s32.totalorder %s22, 1
      %p134 = por %p132, %p133
      %p136 = scmp.ne.s32.totalorder %s121, %s135
      %p137 = scmp.eq.s32.totalorder %s22, 0
      %p138 = por %p136, %p137
      %s140 = sadd.s32 %s139, 1
      %p143 = scmp.eq.s32.totalorder %s16, 1
      %p144 = scmp.ne.s32.totalorder %s139, %s141
      %p145 = scmp.eq.s32.totalorder %s16, 0
      %p146 = por %p144, %p145
      %p147 = scmp.ne.s32.totalorder %s139, %s141
      %p148 = scmp.eq.s32.totalorder %s21, 1
      %p149 = por %p147, %p148
      %p150 = scmp.ne.s32.totalorder %s141, %s142
      %p151 = scmp.eq.s32.totalorder %s21, 0
      %p152 = por %p150, %p151
      %p153 = scmp.ne.s32.totalorder %s141, %s142
      %p154 = scmp.eq.s32.totalorder %s22, 1
      %p155 = por %p153, %p154
      %p157 = scmp.ne.s32.totalorder %s142, %s156
      %p158 = scmp.eq.s32.totalorder %s22, 0
      %p159 = por %p157, %p158
      %s160 = ssub.s32 %s23, %s35
      %s161 = ssub.s32 %s24, %s31
      %s162 = sor.u32 %s160, %s161
      %p163 = scmp.eq.s32.totalorder %s162, 0
      %s165 = sadd.s32 %s164, 1
      %s166 = scalar_select %p163, %s164, %s165
      %p169 = pneg %p163
      %p170 = scmp.eq.s32.totalorder %s16, 1
      %p171 = por %p169, %p170
      %p172 = scmp.ne.s32.totalorder %s164, %s167
      %p173 = scmp.eq.s32.totalorder %s16, 0
      %p174 = por %p172, %p173
      %p175 = scmp.ne.s32.totalorder %s164, %s167
      %p176 = scmp.eq.s32.totalorder %s21, 1
      %p177 = por %p175, %p176
      %p178 = scmp.ne.s32.totalorder %s167, %s168
      %p179 = scmp.eq.s32.totalorder %s21, 0
      %p180 = por %p178, %p179
      %p181 = scmp.ne.s32.totalorder %s167, %s168
      %p182 = scmp.eq.s32.totalorder %s22, 1
      %p183 = por %p181, %p182
      %p185 = scmp.ne.s32.totalorder %s168, %s184
      %p186 = scmp.eq.s32.totalorder %s22, 0
      %p187 = por %p185, %p186
      %p188 = scmp.le.s32.totalorder 1, %s16
      %p189 = scmp.lt.s32.totalorder %s16, 3
      %p190 = pnand %p188, %p189
      %p191 = pneg %p190
      // Predicated region
      $region9: #{tpu_custom_call.1} parent=5 // pred_check
        _
      $region10: #{tpu_custom_call.1} parent=5 // pred_check_branch
        %193 = sbr.rel (%p190) target = $region12
      $region11: #{tpu_custom_call.1} parent=5 // pred_region
        %s194 = ssub.s32 %s16, 1
        // Predicated region
        $region13: #{tpu_custom_call.1} parent=11 // pred_check
          %p195 = pneg %p110
        $region14: #{tpu_custom_call.1} parent=11 // pred_check_branch
          %197 = sbr.rel (%p195) target = $region16
        $region15: #{tpu_custom_call.1} parent=11 // pred_region
          %s198 = smul.u32 2, %s26
          %200 = vsyncadd [#allocation3], 0
          %s201 = smul.addr %s198, 8
          %s202 = scalar_lea.hbm %s2, %s201
          %s203 = sshll.u32 %s202, 4
          %s204 = int_to_ptr.hbm [resolvable:$true] %s203
          %s205 = sshll.u32 [#allocation2], 4
          %s206 = int_to_ptr.vmem [resolvable:$true] %s205
          %211 = dma.hbm_to_vmem [thread:$0]  %s204, 256, %s206, [#allocation3], 128, 128, 8
        $region16: #{tpu_custom_call.1} parent=11 // pred_fallthru
          _
        // Predicated region
        $region17: #{tpu_custom_call.1} parent=11 // pred_check
          %p212 = pneg %p131
        $region18: #{tpu_custom_call.1} parent=11 // pred_check_branch
          %214 = sbr.rel (%p212) target = $region20
        $region19: #{tpu_custom_call.1} parent=11 // pred_region
          %216 = vsyncadd [#allocation6], 0
          %s217 = sshll.u32 %s3, 4
          %s218 = int_to_ptr.hbm [resolvable:$true] %s217
          %s219 = sshll.u32 [#allocation5], 4
          %s220 = int_to_ptr.vmem [resolvable:$true] %s219
          %225 = dma.hbm_to_vmem [thread:$0]  %s218, 384, %s220, [#allocation6], 128, 128, 8
        $region20: #{tpu_custom_call.1} parent=11 // pred_fallthru
          _
        // Predicated region
        $region21: #{tpu_custom_call.1} parent=11 // pred_check
          %p226 = pneg %p152
        $region22: #{tpu_custom_call.1} parent=11 // pred_check_branch
          %228 = sbr.rel (%p226) target = $region24
        $region23: #{tpu_custom_call.1} parent=11 // pred_region
          %230 = vsyncadd [#allocation6], 0
          %s231 = sshll.u32 %s4, 4
          %s232 = int_to_ptr.hbm [resolvable:$true] %s231
          %s233 = sshll.u32 [#allocation7], 4
          %s234 = int_to_ptr.vmem [resolvable:$true] %s233
          %239 = dma.hbm_to_vmem [thread:$0]  %s232, 1280, %s234, [#allocation6], 128, 128, 8
        $region24: #{tpu_custom_call.1} parent=11 // pred_fallthru
          _
      $region12: #{tpu_custom_call.1} parent=5 // pred_fallthru
        _
      %p240 = scmp.lt.s32.totalorder %s16, 2
      // Predicated region
      $region25: #{tpu_custom_call.1} parent=5 // pred_check
        %p241 = pneg %p240
      $region26: #{tpu_custom_call.1} parent=5 // pred_check_branch
        %243 = sbr.rel (%p241) target = $region28
      $region27: #{tpu_custom_call.1} parent=5 // pred_region
        // Predicated region
        $region29: #{tpu_custom_call.1} parent=27 // pred_check
          %p244 = pneg %p50
        $region30: #{tpu_custom_call.1} parent=27 // pred_check_branch
          %246 = sbr.rel (%p244) target = $region32
        $region31: #{tpu_custom_call.1} parent=27 // pred_region
          %s247 = smul.u32 2, %s24
          %p248 = scmp.lt.s32.totalorder %s23, 1
          %s249 = scalar_select %p248, %s23, 1
          %p250 = scmp.lt.s32.totalorder %s247, 1
          %s251 = scalar_select %p250, %s247, 1
          %s252 = smul.addr %s249, 2
          %s253 = sadd.s32 %s251, %s252
          %s254 = smul.addr %s253, 8
          %s255 = scalar_lea.vmem %s0, %s254
          %s256 = smul.u32 2, %s24
        $region32: #{tpu_custom_call.1} parent=27 // pred_fallthru
          _
        // Predicated region
        $region33: #{tpu_custom_call.1} parent=27 // pred_check
          %p257 = pneg %p78
        $region34: #{tpu_custom_call.1} parent=27 // pred_check_branch
          %259 = sbr.rel (%p257) target = $region36
        $region35: #{tpu_custom_call.1} parent=27 // pred_region
          %s260 = smul.u32 2, %s24
          %p261 = scmp.lt.s32.totalorder %s23, 1
          %s262 = scalar_select %p261, %s23, 1
          %p263 = scmp.lt.s32.totalorder %s260, 1
          %s264 = scalar_select %p263, %s260, 1
          %s265 = smul.addr %s262, 2
          %s266 = sadd.s32 %s264, %s265
          %s267 = smul.addr %s266, 8
          %s268 = scalar_lea.vmem %s1, %s267
          %s269 = smul.u32 2, %s24
        $region36: #{tpu_custom_call.1} parent=27 // pred_fallthru
          _
      $region28: #{tpu_custom_call.1} parent=5 // pred_fallthru
        _
      %p270 = scmp.le.s32.totalorder 1, %s16
      %p271 = scmp.lt.s32.totalorder %s16, 3
      %p272 = pnand %p270, %p271
      %p273 = pneg %p272
      // Predicated region
      $region37: #{tpu_custom_call.1} parent=5 // pred_check
        _
      $region38: #{tpu_custom_call.1} parent=5 // pred_check_branch
        %275 = sbr.rel (%p272) target = $region40
      $region39: #{tpu_custom_call.1} parent=5 // pred_region
        %s276 = ssub.s32 %s16, 1
        // Predicated region
        $region41: #{tpu_custom_call.1} parent=39 // pred_check
          %p277 = pneg %p110
        $region42: #{tpu_custom_call.1} parent=39 // pred_check_branch
          %279 = sbr.rel (%p277) target = $region44
        $region43: #{tpu_custom_call.1} parent=39 // pred_region
          %281 = dma.done [#allocation3], 256
        $region44: #{tpu_custom_call.1} parent=39 // pred_fallthru
          _
        // Predicated region
        $region45: #{tpu_custom_call.1} parent=39 // pred_check
          %p282 = pneg %p131
        $region46: #{tpu_custom_call.1} parent=39 // pred_check_branch
          %284 = sbr.rel (%p282) target = $region48
        $region47: #{tpu_custom_call.1} parent=39 // pred_region
          %286 = dma.done [#allocation6], 384
        $region48: #{tpu_custom_call.1} parent=39 // pred_fallthru
          _
        // Predicated region
        $region49: #{tpu_custom_call.1} parent=39 // pred_check
          %p287 = pneg %p152
        $region50: #{tpu_custom_call.1} parent=39 // pred_check_branch
          %289 = sbr.rel (%p287) target = $region52
        $region51: #{tpu_custom_call.1} parent=39 // pred_region
          %291 = dma.done [#allocation6], 1280
        $region52: #{tpu_custom_call.1} parent=39 // pred_fallthru
          _
        %s292 = smul.u32 2, %s26
        %p293 = scmp.lt.s32.totalorder %s25, 1
        %s294 = scalar_select %p293, %s25, 1
        %p295 = scmp.lt.s32.totalorder %s292, 1
        %s296 = scalar_select %p295, %s292, 1
        %s297 = smul.addr %s294, 2
        %s298 = sadd.s32 %s296, %s297
        %s299 = smul.addr %s298, 8
        %s300 = scalar_lea.vmem %s0, %s299
        %p301 = pneg %p56
        %p302 = pneg %p53
        %s303 = smul.u32 2, %s26
        %p304 = scmp.lt.s32.totalorder %s25, 1
        %s305 = scalar_select %p304, %s25, 1
        %p306 = scmp.lt.s32.totalorder %s303, 1
        %s307 = scalar_select %p306, %s303, 1
        %s308 = smul.addr %s305, 2
        %s309 = sadd.s32 %s307, %s308
        %s310 = smul.addr %s309, 8
        %s311 = scalar_lea.vmem %s1, %s310
        %p312 = pneg %p84
        %p313 = pneg %p81
        %p314 = pneg %p110
        %p315 = pneg %p107
        %p316 = pneg %p131
        %p317 = pneg %p128
        %p318 = pneg %p152
        %p319 = pneg %p149
        %p320 = pneg %p180
        %p321 = pneg %p177
        %s322 = sand.u32 %s167, 1
        %s323 = scalar_lea.sflag [#allocation4], %s322
        %s324 = sand.u32 %s167, 1
        %s325 = smul.addr %s324, 16
        %s326 = scalar_lea.vmem [#allocation8], %s325
        %s327 = smul.u32 2, %s26
        %p328 = scmp.lt.s32.totalorder %s25, 1
        %s329 = scalar_select %p328, %s25, 1
        %p330 = scmp.lt.s32.totalorder %s327, 1
        %s331 = scalar_select %p330, %s327, 1
        %s332 = smul.addr %s329, 2
        %s333 = sadd.s32 %s331, %s332
        %s334 = smul.addr %s333, 8
        %s335 = scalar_lea.vmem %s0, %s334
        %s336 = smul.u32 2, %s26
        %s337 = smul.u32 2, %s26
        %p338 = scmp.lt.s32.totalorder %s25, 1
        %s339 = scalar_select %p338, %s25, 1
        %p340 = scmp.lt.s32.totalorder %s337, 1
        %s341 = scalar_select %p340, %s337, 1
        %s342 = smul.addr %s339, 2
        %s343 = sadd.s32 %s341, %s342
        %s344 = smul.addr %s343, 8
        %s345 = scalar_lea.vmem %s1, %s344
        %s346 = smul.u32 2, %s26
        %s347 = smul.u32 2, %s26
        %s348 = smul.u32 2, %s26
        %v349 = vld [vmem:[%s335] sm:$0xff]
        %v350 = vld [vmem:[%s335 + $0x8] sm:$0xff]
        %v351 = vld [vmem:[#allocation5] sm:$0xff]
        %v352 = vld [vmem:[#allocation5 + $0x8] sm:$0xff]
        %v353 = vld [vmem:[#allocation5 + $0x10] sm:$0x1f]
        %v354 = vld [vmem:[%s345] sm:$0xff]
        %v355 = vld [vmem:[%s345 + $0x8] sm:$0xff]
        %v356 = vlaneseq
        %v357 = vand.u32 %v356, 127
        %358 = vset.pattern.permute.xlu0 0
        %359 = vperm.xlu0 %358, %v354
        %v360 = vpop.permute.xlu0 %359
        %361 = vset.pattern.permute.xlu0 0
        %362 = vperm.xlu0 %361, %v355
        %v363 = vpop.permute.xlu0 %362
        %vm364 = vcmp.eq.s32.totalorder %v360, %v357
        %vm365 = vcmp.eq.s32.totalorder %v363, %v357
        %v366 = vsel %vm364, 1, 0
        %v367 = vsel %vm365, 1, 0
        %v368 = vcvt.s32.f32 %v366
        %v369 = vcvt.s32.f32 %v367
        %v370 = vadd.f32 %v368, 0.0
        %v371 = vadd.f32 %v369, 0.0
        %372 = vset.pattern.permute.xlu0 1
        %373 = vperm.xlu0 %372, %v354
        %v374 = vpop.permute.xlu0 %373
        %375 = vset.pattern.permute.xlu0 1
        %376 = vperm.xlu0 %375, %v355
        %v377 = vpop.permute.xlu0 %376
        %vm378 = vcmp.eq.s32.totalorder %v374, %v357
        %vm379 = vcmp.eq.s32.totalorder %v377, %v357
        %v380 = vsel %vm378, 1, 0
        %v381 = vsel %vm379, 1, 0
        %v382 = vcvt.s32.f32 %v380
        %v383 = vcvt.s32.f32 %v381
        %v384 = vadd.f32 %v370, %v382
        %v385 = vadd.f32 %v371, %v383
        %386 = vset.pattern.permute.xlu0 2
        %387 = vperm.xlu0 %386, %v354
        %v388 = vpop.permute.xlu0 %387
        %389 = vset.pattern.permute.xlu0 2
        %390 = vperm.xlu0 %389, %v355
        %v391 = vpop.permute.xlu0 %390
        %vm392 = vcmp.eq.s32.totalorder %v388, %v357
        %vm393 = vcmp.eq.s32.totalorder %v391, %v357
        %v394 = vsel %vm392, 1, 0
        %v395 = vsel %vm393, 1, 0
        %v396 = vcvt.s32.f32 %v394
        %v397 = vcvt.s32.f32 %v395
        %v398 = vadd.f32 %v384, %v396
        %v399 = vadd.f32 %v385, %v397
        %400 = vset.pattern.permute.xlu0 3
        %401 = vperm.xlu0 %400, %v354
        %v402 = vpop.permute.xlu0 %401
        %403 = vset.pattern.permute.xlu0 3
        %404 = vperm.xlu0 %403, %v355
        %v405 = vpop.permute.xlu0 %404
        %vm406 = vcmp.eq.s32.totalorder %v402, %v357
        %vm407 = vcmp.eq.s32.totalorder %v405, %v357
        %v408 = vsel %vm406, 1, 0
        %v409 = vsel %vm407, 1, 0
        %v410 = vcvt.s32.f32 %v408
        %v411 = vcvt.s32.f32 %v409
        %v412 = vadd.f32 %v398, %v410
        %v413 = vadd.f32 %v399, %v411
        %v414 = vld [vmem:[#allocation7] sm:$0xff]
        %v415 = vld [vmem:[#allocation7 + $0x8] sm:$0xff]
        %v416 = vld [vmem:[#allocation7 + $0x10] sm:$0xff]
        %v417 = vld [vmem:[#allocation7 + $0x18] sm:$0xff]
        %v418 = vld [vmem:[#allocation7 + $0x20] sm:$0xff]
        %v419 = vld [vmem:[#allocation7 + $0x28] sm:$0xff]
        %v420 = vld [vmem:[#allocation7 + $0x30] sm:$0xff]
        %v421 = vld [vmem:[#allocation7 + $0x38] sm:$0xff]
        %v422 = vld [vmem:[#allocation7 + $0x40] sm:$0xff]
        %v423 = vld [vmem:[#allocation7 + $0x48] sm:$0xf]
        %vm424 = vcmask 621568
        %v426 = vsel %vm424, %v412, 0
        %v429 = vsel %vm424, %v413, 0
        %vm431 = vcmask 1043456
        %v433 = vsel %vm431, %v423, 0
        %435 = vmatpush.msra.mxu0 0.0
        %436 = vmatpush.msra.mxu0 0.0
        %437 = vmatpush.msra.mxu0 0.0
        %438 = vmatpush.msra.mxu0 0.0
        %439 = vmatpush.msra.mxu0 0.0
        %440 = vmatpush.msra.mxu0 0.0
        %441 = vmatpush.msra.mxu0 %v433
        %442 = vmatpush.msra.mxu0 %v422
        %443 = vmatpush.msra.mxu0 %v421
        %444 = vmatpush.msra.mxu0 %v420
        %445 = vmatpush.msra.mxu0 %v419
        %446 = vmatpush.msra.mxu0 %v418
        %447 = vmatpush.msra.mxu0 %v417
        %448 = vmatpush.msra.mxu0 %v416
        %449 = vmatpush.msra.mxu0 %v415
        %450 = vmatpush.msra.mxu0 %v414
        %451 = vmatmul.f32.gmra.mxu0 %v426
        %v452 = vpop.f32.mrf.mxu0
        %v453 = vadd.f32 0.0, %v452
        %454 = vmatmul.f32.gmra.mxu0 %v429
        %v455 = vpop.f32.mrf.mxu0
        %v456 = vadd.f32 0.0, %v455
        %457 = vdwg.mxu0
        %vm458 = vcmask 171008
        %v460 = vsel %vm458, %v349, 0
        %v463 = vsel %vm458, %v350, 0
        %vm465 = vcmask 1044480
        %v467 = vsel %vm465, %v353, 0
        %469 = vmatpush.msra.mxu0 0.0
        %470 = vmatpush.msra.mxu0 0.0
        %471 = vmatpush.msra.mxu0 0.0
        %472 = vmatpush.msra.mxu0 0.0
        %473 = vmatpush.msra.mxu0 0.0
        %474 = vmatpush.msra.mxu0 0.0
        %475 = vmatpush.msra.mxu0 0.0
        %476 = vmatpush.msra.mxu0 0.0
        %477 = vmatpush.msra.mxu0 0.0
        %478 = vmatpush.msra.mxu0 0.0
        %479 = vmatpush.msra.mxu0 0.0
        %480 = vmatpush.msra.mxu0 0.0
        %481 = vmatpush.msra.mxu0 0.0
        %482 = vmatpush.msra.mxu0 %v467
        %483 = vmatpush.msra.mxu0 %v352
        %484 = vmatpush.msra.mxu0 %v351
        %485 = vmatmul.f32.gmra.mxu0 %v460
        %v486 = vpop.f32.mrf.mxu0
        %v487 = vadd.f32 %v453, %v486
        %488 = vmatmul.f32.gmra.mxu0 %v463
        %v489 = vpop.f32.mrf.mxu0
        %v490 = vadd.f32 %v456, %v489
        %491 = vdwg.mxu0
        %v492 = vld [vmem:[#allocation2] sm:$0xff]
        %v493 = vld [vmem:[#allocation2 + $0x8] sm:$0xff]
        %v494 = vadd.f32 %v487, %v492
        %v495 = vadd.f32 %v490, %v493
        %496 = vst [vmem:[%s326] sm:$0xff] %v494
        %497 = vst [vmem:[%s326 + $0x8] sm:$0xff] %v495
        %s498 = sand.u32 %s167, 1
        %s499 = scalar_lea.sflag [#allocation4], %s498
        %s500 = sand.u32 %s167, 1
        %s501 = smul.addr %s500, 16
        %s502 = scalar_lea.vmem [#allocation8], %s501
        // Predicated region
        $region53: #{tpu_custom_call.1} parent=39 // pred_check
          %p503 = pneg %p177
        $region54: #{tpu_custom_call.1} parent=39 // pred_check_branch
          %505 = sbr.rel (%p503) target = $region56
        $region55: #{tpu_custom_call.1} parent=39 // pred_region
          %s506 = smul.u32 2, %s26
          %508 = vsyncadd %s499, 0
          %s509 = smul.addr %s25, 2
          %s510 = sadd.s32 %s506, %s509
          %s511 = smul.addr %s510, 8
          %s512 = scalar_lea.hbm %s5, %s511
          %s513 = sshll.u32 %s502, 4
          %s514 = int_to_ptr.vmem [resolvable:$true] %s513
          %s515 = sshll.u32 %s512, 4
          %s516 = int_to_ptr.hbm [resolvable:$true] %s515
          %521 = dma.vmem_to_hbm [thread:$0]  %s514, 256, %s516, %s499, 128, 128, 8
        $region56: #{tpu_custom_call.1} parent=39 // pred_fallthru
          _
      $region40: #{tpu_custom_call.1} parent=5 // pred_fallthru
        _
      %p522 = scmp.le.s32.totalorder 2, %s16
      // Predicated region
      $region57: #{tpu_custom_call.1} parent=5 // pred_check
        %p523 = pneg %p522
      $region58: #{tpu_custom_call.1} parent=5 // pred_check_branch
        %525 = sbr.rel (%p523) target = $region60
      $region59: #{tpu_custom_call.1} parent=5 // pred_region
        %s526 = ssub.s32 %s16, 2
        // Predicated region
        $region61: #{tpu_custom_call.1} parent=59 // pred_check
          %p527 = pneg %p183
        $region62: #{tpu_custom_call.1} parent=59 // pred_check_branch
          %529 = sbr.rel (%p527) target = $region64
        $region63: #{tpu_custom_call.1} parent=59 // pred_region
          %s530 = sand.u32 %s168, 1
          %s531 = scalar_lea.sflag [#allocation4], %s530
          %s532 = sand.u32 %s168, 1
          %s533 = smul.addr %s532, 16
          %s534 = scalar_lea.vmem [#allocation8], %s533
          %536 = dma.done %s531, 256
        $region64: #{tpu_custom_call.1} parent=59 // pred_fallthru
          _
      $region60: #{tpu_custom_call.1} parent=5 // pred_fallthru
        _
    $region6: #{tpu_custom_call.1} parent=1 // loop_footer
      %s20 = sadd.s32 1, %s16
    $region7: #{tpu_custom_call.1} parent=1 // loop_footer_branch
      %15 = sbr.rel target = $region3
    $region8: #{tpu_custom_call.1} parent=1 // loop_exit
      _
    %537 = vsyncpa [#allocation3], 1
    %s538 = scalar_lea.sflag [#allocation3], 1
    %539 = vsyncpa %s538, 1
    %540 = vsyncpa [#allocation6], 1
    %541 = vsyncpa [#allocation4], 1
    %s542 = scalar_lea.sflag [#allocation4], 1
    %543 = vsyncpa %s542, 1

</llo_original>
